<compile_context>
chip_gen: v7x
topology: tpu7x:2x2x1
jax: 0.10.0
libtpu: 0.0.40
codegen_flags: <defaults>
</compile_context>

<pallas_src>
import functools

import jax
import jax.numpy as jnp
from jax.experimental import pallas as pl
from jax.experimental.pallas import tpu as pltpu


def _rmsnorm_kernel(x_ref, w_ref, o_ref, *, eps):
    # x_ref: (tile_rows, d_model), w_ref: (1, d_model)
    x = x_ref[...].astype(jnp.float32)
    ms = jnp.mean(x * x, axis=-1, keepdims=True)           # (tile_rows, 1)
    inv_rms = jax.lax.rsqrt(ms + eps)                       # EUP rsqrt
    y = x * inv_rms * w_ref[...].astype(jnp.float32)
    o_ref[...] = y.astype(o_ref.dtype)


def _pick_tile_rows(rows, d_model, itemsize):
    """Largest row tile that fits the VMEM budget, multiple of the packing."""
    # Sublane packing granularity: 8 for 4-byte, 16 for 2-byte, 32 for 1-byte.
    if itemsize >= 4:
        mult = 8
    elif itemsize == 2:
        mult = 16
    else:
        mult = 32

    # Double-buffered input + output tiles: 4 * tile_rows * d_model * itemsize.
    # Budget ~24 MiB so it comfortably fits v7x's 64 MiB physical VMEM with
    # headroom for f32 temporaries and the (tiny) weight buffer; v5e/v6e have
    # 128 MiB so this is trivially safe there too.
    budget_bytes = 24 * 1024 * 1024
    max_rows = budget_bytes // (4 * d_model * itemsize)
    max_rows = max(mult, (max_rows // mult) * mult)

    rows_padded = ((rows + mult - 1) // mult) * mult
    tile_rows = min(max_rows, rows_padded)

    # If the whole problem fits in one tile, split it in two so the "parallel"
    # grid axis can still shard across both TensorCores on v7x (megacore).
    if tile_rows == rows_padded and rows_padded >= 2 * mult:
        half = rows_padded // 2
        tile_rows = ((half + mult - 1) // mult) * mult

    return tile_rows


def rmsnorm(x, weight, eps=1e-6, *, tile_rows=None):
    """RMSNorm over the last axis of x, scaled by `weight` (shape (d_model,))."""
    orig_shape = x.shape
    d_model = orig_shape[-1]
    rows = 1
    for s in orig_shape[:-1]:
        rows *= s

    x2 = x.reshape(rows, d_model)
    w2 = weight.reshape(1, d_model)

    x_itemsize = jnp.dtype(x.dtype).itemsize
    if tile_rows is None:
        tile_rows = _pick_tile_rows(rows, d_model, x_itemsize)

    n_tiles = pl.cdiv(rows, tile_rows)   # partial last block handled by Pallas

    cost = pl.CostEstimate(
        flops=3 * rows * d_model,
        transcendentals=rows,
        bytes_accessed=2 * rows * d_model * x_itemsize
        + d_model * jnp.dtype(weight.dtype).itemsize,
    )

    out = pl.pallas_call(
        functools.partial(_rmsnorm_kernel, eps=eps),
        out_shape=jax.ShapeDtypeStruct((rows, d_model), x.dtype),
        grid_spec=pltpu.PrefetchScalarGridSpec(
            num_scalar_prefetch=0,
            grid=(n_tiles,),
            in_specs=[
                pl.BlockSpec((tile_rows, d_model), lambda i: (i, 0)),
                # Constant index_map keeps the weight VMEM-resident across the grid.
                pl.BlockSpec((1, d_model), lambda i: (0, 0)),
            ],
            out_specs=pl.BlockSpec((tile_rows, d_model), lambda i: (i, 0)),
        ),
        compiler_params=pltpu.CompilerParams(
            dimension_semantics=("parallel",),
            vmem_limit_bytes=64 * 1024 * 1024,
        ),
        cost_estimate=cost,
    )(x2, w2)

    return out.reshape(orig_shape)


def _ref_rmsnorm(x, weight, eps):
    rms = jnp.sqrt(jnp.mean(x.astype(jnp.float32) ** 2, axis=-1, keepdims=True) + eps)
    return (x / rms * weight).astype(x.dtype)


if __name__ == "__main__":
    key = jax.random.PRNGKey(0)
    kx, kw, kx2 = jax.random.split(key, 3)

    # Lane-dense demo shape: d_model a multiple of 128 avoids the masked
    # partial-store path (biggest single lever for store-bound elementwise ops).
    batch, seq, d_model = 2, 8, 128
    x = jax.random.normal(kx, (batch, seq, d_model), dtype=jnp.float32)
    # Non-trivial deterministic weight to exercise the scale path
    # (module init is ones; semantics are identical).
    weight = 1.0 + 0.1 * jax.random.normal(kw, (d_model,), dtype=jnp.float32)

    y = rmsnorm(x, weight, eps=1e-6)
    jax.block_until_ready(y)
    assert jnp.allclose(y, _ref_rmsnorm(x, weight, 1e-6), atol=1e-5, rtol=1e-5)

    # Ragged row count (rows = 15, not a multiple of the 8-row tile) to check
    # the pad-free partial-last-block path.
    x_ragged = jax.random.normal(kx2, (3, 5, d_model), dtype=jnp.float32)
    y_ragged = rmsnorm(x_ragged, weight, eps=1e-6)
    jax.block_until_ready(y_ragged)
    assert jnp.allclose(
        y_ragged, _ref_rmsnorm(x_ragged, weight, 1e-6), atol=1e-5, rtol=1e-5
    )

    print("KERNEL_OK")
</pallas_src>

<mosaic_0001>
module attributes {stable_mosaic.version = 11 : i64} {
  func.func @_rmsnorm_kernel(%arg0: i32, %arg1: memref<8x128xf32, #tpu.memory_space<vmem>>, %arg2: memref<1x128xf32, #tpu.memory_space<vmem>>, %arg3: memref<8x128xf32, #tpu.memory_space<vmem>>) attributes {dimension_semantics = [#tpu.dimension_semantics<parallel>], iteration_bounds = array<i64: 2>, scalar_prefetch = 0 : i64, scratch_operands = 0 : i64, tpu.core_type = #tpu.core_type<tc>, window_params = [{transform_indices = @transform_0, window_bounds = array<i64: 8, 128>}, {pipeline_mode = #tpu.pipeline_mode<synchronous>, transform_indices = @transform_1, window_bounds = array<i64: 1, 128>}, {transform_indices = @transform_2, window_bounds = array<i64: 8, 128>}]} {
    %c0 = arith.constant 0 : index
    %c0_0 = arith.constant 0 : index
    %0 = vector.load %arg1[%c0, %c0_0] : memref<8x128xf32, #tpu.memory_space<vmem>>, vector<8x128xf32>
    %1 = arith.mulf %0, %0 : vector<8x128xf32>
    %cst = arith.constant dense<0.000000e+00> : vector<8xf32>
    %2 = vector.multi_reduction <add>, %1, %cst [1] : vector<8x128xf32> to vector<8xf32>
    %3 = vector.shape_cast %2 : vector<8xf32> to vector<8x1xf32>
    %cst_1 = arith.constant 1.280000e+02 : f32
    %4 = vector.broadcast %cst_1 : f32 to vector<8x1xf32>
    %5 = arith.divf %3, %4 : vector<8x1xf32>
    %cst_2 = arith.constant 9.99999997E-7 : f32
    %6 = vector.broadcast %cst_2 : f32 to vector<8x1xf32>
    %7 = arith.addf %5, %6 : vector<8x1xf32>
    %8 = math.rsqrt %7 : vector<8x1xf32>
    %9 = vector.broadcast %8 : vector<8x1xf32> to vector<8x128xf32>
    %10 = arith.mulf %0, %9 : vector<8x128xf32>
    %c0_3 = arith.constant 0 : index
    %c0_4 = arith.constant 0 : index
    %11 = vector.load %arg2[%c0_3, %c0_4] : memref<1x128xf32, #tpu.memory_space<vmem>>, vector<1x128xf32>
    %12 = vector.broadcast %11 : vector<1x128xf32> to vector<8x128xf32>
    %13 = arith.mulf %10, %12 : vector<8x128xf32>
    %c0_5 = arith.constant 0 : index
    %c0_6 = arith.constant 0 : index
    %14 = vector.load %arg3[%c0_5, %c0_6] : memref<8x128xf32, #tpu.memory_space<vmem>>, vector<8x128xf32>
    tpu.vector_store %arg3[%c0_5, %c0_6], %13 {strides = array<i32>} : memref<8x128xf32, #tpu.memory_space<vmem>>, vector<8x128xf32>,
    return
  }
  func.func @transform_0(%arg0: i32) -> (i32, i32) {
    %c0_i32 = arith.constant 0 : i32
    %c0_i32_0 = arith.constant 0 : i32
    return %arg0, %c0_i32 : i32, i32
  }
  func.func @transform_1(%arg0: i32) -> (i32, i32) {
    %c0_i32 = arith.constant 0 : i32
    %c0_i32_0 = arith.constant 0 : i32
    %c0_i32_1 = arith.constant 0 : i32
    return %c0_i32, %c0_i32_0 : i32, i32
  }
  func.func @transform_2(%arg0: i32) -> (i32, i32) {
    %c0_i32 = arith.constant 0 : i32
    %c0_i32_0 = arith.constant 0 : i32
    return %arg0, %c0_i32 : i32, i32
  }
}

</mosaic_0001>

<llo_original>
// kernel: tpu_custom_call.1
$region0: #{tpu_custom_call.1}
  #allocation0 [shape = 'u32[]', space=smem, size = 0x4, offset = 0x4, fixed_abs, tag = 'smem constant byte address 0x4 - core index']
  #allocation1 [shape = 'u32[144,128]{1,0:T(1,128)}', space=vmem, size = 0x12000, scoped, tag = 'internal scratch']
  %s0 = inlined_call_operand.hbm [shape: f32[16,128], index: 0, kind: input, shape index: {}]
  %s1 = inlined_call_operand.hbm [shape: f32[1,128], index: 1, kind: input, shape index: {}]
  %s2 = inlined_call_operand.hbm [shape: f32[16,128], index: 2, kind: output, shape index: {}]
  %s3 = sld [smem:[#allocation0]]
  $region49: #{tpu_custom_call.1} parent=0
    _
  %s5 = ssub.s32 1, %s3
  %s6 = scalar_select 0, %s5, %s3
  $region1: #{tpu_custom_call.1} parent=0
    #allocation2 [shape = 'u8[8192]{0}', space=vmem, size = 0x2000, scoped, tag = 'input window, operand 0']
    #allocation3 [shape = 's32[2]{0}', space=sflag, size = 0x8, scoped, tag = 'scoped memory for tpu_custom_call.1']
    #allocation4 [shape = 's32[2]{0}', space=sflag, size = 0x8, scoped, tag = 'scoped memory for tpu_custom_call.1']
    #allocation5 [shape = 'u8[512]{0}', space=vmem, size = 0x400, scoped, tag = 'input window, operand 1, single buffered']
    #allocation6 [shape = 's32[1]{0}', space=sflag, size = 0x4, scoped, tag = 'scoped memory for tpu_custom_call.1']
    #allocation7 [shape = 'u8[8192]{0}', space=vmem, size = 0x2000, scoped, tag = 'output window, operand 0']
    %7 = vsyncpa [#allocation3], 0
    %s8 = scalar_lea.sflag [#allocation3], 1
    %9 = vsyncpa %s8, 0
    %10 = vsyncpa [#allocation6], 0
    %11 = vsyncpa [#allocation4], 0
    %s12 = scalar_lea.sflag [#allocation4], 1
    %13 = vsyncpa %s12, 0
    loop: start=0, step=1, limit=4
    $region2: #{tpu_custom_call.1} parent=1 // loop_pre_header
      _
    $region3: #{tpu_custom_call.1} parent=1 // loop_header
      %s15 = sphi 0, %s19
      %p16 = scmp.ge.s32.totalorder %s15, 4
      %s25 = sphi 0, %s27
      %s28 = sphi 0, %s25
      %s29 = sphi 0, %s28
      %s45 = sphi 0, %s29
      %s49 = sphi 0, %s49
      %s51 = sphi 0, %s49
      %s52 = sphi 0, %s51
      %s66 = sphi 0, %s52
      %s72 = sphi 0, %s74
      %s75 = sphi 0, %s72
      %s76 = sphi 0, %s75
      %s92 = sphi 0, %s76
    $region4: #{tpu_custom_call.1} parent=1 // loop_header_branch
      %18 = sbr.rel (%p16) target = $region8
    $region5: #{tpu_custom_call.1} parent=1 // loop_body
      %s20 = ssub.s32 %s15, 1
      %s21 = ssub.s32 %s15, 2
      %s22 = sadd.s32 %s15, 1
      %s23 = ssub.s32 %s15, %s22
      %p24 = scmp.eq.s32.totalorder %s23, 0
      %s26 = sadd.s32 %s25, 1
      %s27 = scalar_select %p24, %s25, %s26
      %p30 = pneg %p24
      %p31 = scmp.eq.s32.totalorder %s15, 1
      %p32 = por %p30, %p31
      %p33 = scmp.ne.s32.totalorder %s25, %s28
      %p34 = scmp.eq.s32.totalorder %s15, 0
      %p35 = por %p33, %p34
      %p36 = scmp.ne.s32.totalorder %s25, %s28
      %p37 = scmp.eq.s32.totalorder %s20, 1
      %p38 = por %p36, %p37
      %p39 = scmp.ne.s32.totalorder %s28, %s29
      %p40 = scmp.eq.s32.totalorder %s20, 0
      %p41 = por %p39, %p40
      %p42 = scmp.ne.s32.totalorder %s28, %s29
      %p43 = scmp.eq.s32.totalorder %s21, 1
      %p44 = por %p42, %p43
      %p46 = scmp.ne.s32.totalorder %s29, %s45
      %p47 = scmp.eq.s32.totalorder %s21, 0
      %p48 = por %p46, %p47
      %s50 = sadd.s32 %s49, 1
      %p53 = scmp.eq.s32.totalorder %s15, 1
      %p54 = scmp.ne.s32.totalorder %s49, %s51
      %p55 = scmp.eq.s32.totalorder %s15, 0
      %p56 = por %p54, %p55
      %p57 = scmp.ne.s32.totalorder %s49, %s51
      %p58 = scmp.eq.s32.totalorder %s20, 1
      %p59 = por %p57, %p58
      %p60 = scmp.ne.s32.totalorder %s51, %s52
      %p61 = scmp.eq.s32.totalorder %s20, 0
      %p62 = por %p60, %p61
      %p63 = scmp.ne.s32.totalorder %s51, %s52
      %p64 = scmp.eq.s32.totalorder %s21, 1
      %p65 = por %p63, %p64
      %p67 = scmp.ne.s32.totalorder %s52, %s66
      %p68 = scmp.eq.s32.totalorder %s21, 0
      %p69 = por %p67, %p68
      %s70 = ssub.s32 %s15, %s22
      %p71 = scmp.eq.s32.totalorder %s70, 0
      %s73 = sadd.s32 %s72, 1
      %s74 = scalar_select %p71, %s72, %s73
      %p77 = pneg %p71
      %p78 = scmp.eq.s32.totalorder %s15, 1
      %p79 = por %p77, %p78
      %p80 = scmp.ne.s32.totalorder %s72, %s75
      %p81 = scmp.eq.s32.totalorder %s15, 0
      %p82 = por %p80, %p81
      %p83 = scmp.ne.s32.totalorder %s72, %s75
      %p84 = scmp.eq.s32.totalorder %s20, 1
      %p85 = por %p83, %p84
      %p86 = scmp.ne.s32.totalorder %s75, %s76
      %p87 = scmp.eq.s32.totalorder %s20, 0
      %p88 = por %p86, %p87
      %p89 = scmp.ne.s32.totalorder %s75, %s76
      %p90 = scmp.eq.s32.totalorder %s21, 1
      %p91 = por %p89, %p90
      %p93 = scmp.ne.s32.totalorder %s76, %s92
      %p94 = scmp.eq.s32.totalorder %s21, 0
      %p95 = por %p93, %p94
      %p96 = scmp.le.s32.totalorder 1, %s15
      %p97 = scmp.lt.s32.totalorder %s15, 3
      %p98 = pnand %p96, %p97
      %p99 = pneg %p98
      // Predicated region
      $region9: #{tpu_custom_call.1} parent=5 // pred_check
        _
      $region10: #{tpu_custom_call.1} parent=5 // pred_check_branch
        %101 = sbr.rel (%p98) target = $region12
      $region11: #{tpu_custom_call.1} parent=5 // pred_region
        %s102 = ssub.s32 %s15, 1
        // Predicated region
        $region13: #{tpu_custom_call.1} parent=11 // pred_check
          %p103 = pneg %p62
        $region14: #{tpu_custom_call.1} parent=11 // pred_check_branch
          %105 = sbr.rel (%p103) target = $region16
        $region15: #{tpu_custom_call.1} parent=11 // pred_region
          %s107 = ssub.s32 16, 16
          %108 = vsyncadd [#allocation6], %s107
          %s110 = sshll.u32 [#allocation5], 4
          %s111 = int_to_ptr.vmem [resolvable:$true] %s110
          %113 = dma.hbm_to_vmem [thread:$0]  %s1, 16, %s111, [#allocation6]
        $region16: #{tpu_custom_call.1} parent=11 // pred_fallthru
          _
      $region12: #{tpu_custom_call.1} parent=5 // pred_fallthru
        _
      %p114 = scmp.lt.s32.totalorder %s15, 2
      // Predicated region
      $region17: #{tpu_custom_call.1} parent=5 // pred_check
        %p115 = pneg %p114
      $region18: #{tpu_custom_call.1} parent=5 // pred_check_branch
        %117 = sbr.rel (%p115) target = $region20
      $region19: #{tpu_custom_call.1} parent=5 // pred_region
        // Predicated region
        $region21: #{tpu_custom_call.1} parent=19 // pred_check
          %p118 = pneg %p35
        $region22: #{tpu_custom_call.1} parent=19 // pred_check_branch
          %120 = sbr.rel (%p118) target = $region24
        $region23: #{tpu_custom_call.1} parent=19 // pred_region
          %s121 = sand.u32 %s25, 1
          %s122 = scalar_lea.sflag [#allocation3], %s121
          %s123 = sand.u32 %s25, 1
          %s124 = smul.addr %s123, 8
          %s125 = scalar_lea.vmem [#allocation2], %s124
          %s127 = ssub.s32 128, 128
          %128 = vsyncadd %s122, %s127
          %s129 = smul.addr %s15, 128
          %s130 = scalar_lea.hbm %s0, %s129
          %s132 = sshll.u32 %s125, 4
          %s133 = int_to_ptr.vmem [resolvable:$true] %s132
          %135 = dma.hbm_to_vmem [thread:$0]  %s130, 128, %s133, %s122
        $region24: #{tpu_custom_call.1} parent=19 // pred_fallthru
          _
      $region20: #{tpu_custom_call.1} parent=5 // pred_fallthru
        _
      %p136 = scmp.le.s32.totalorder 1, %s15
      %p137 = scmp.lt.s32.totalorder %s15, 3
      %p138 = pnand %p136, %p137
      %p139 = pneg %p138
      // Predicated region
      $region25: #{tpu_custom_call.1} parent=5 // pred_check
        _
      $region26: #{tpu_custom_call.1} parent=5 // pred_check_branch
        %141 = sbr.rel (%p138) target = $region28
      $region27: #{tpu_custom_call.1} parent=5 // pred_region
        %s142 = ssub.s32 %s15, 1
        %s143 = sand.u32 %s28, 1
        %s144 = scalar_lea.sflag [#allocation3], %s143
        %s145 = sand.u32 %s28, 1
        %s146 = smul.addr %s145, 8
        %s147 = scalar_lea.vmem [#allocation2], %s146
        // Predicated region
        $region29: #{tpu_custom_call.1} parent=27 // pred_check
          %p148 = pneg %p41
        $region30: #{tpu_custom_call.1} parent=27 // pred_check_branch
          %150 = sbr.rel (%p148) target = $region32
        $region31: #{tpu_custom_call.1} parent=27 // pred_region
          %151 = dma.done %s144, 128
        $region32: #{tpu_custom_call.1} parent=27 // pred_fallthru
          _
        // Predicated region
        $region33: #{tpu_custom_call.1} parent=27 // pred_check
          %p152 = pneg %p62
        $region34: #{tpu_custom_call.1} parent=27 // pred_check_branch
          %154 = sbr.rel (%p152) target = $region36
        $region35: #{tpu_custom_call.1} parent=27 // pred_region
          %155 = dma.done [#allocation6], 16
        $region36: #{tpu_custom_call.1} parent=27 // pred_fallthru
          _
        %s156 = sand.u32 %s28, 1
        %s157 = scalar_lea.sflag [#allocation3], %s156
        %s158 = sand.u32 %s28, 1
        %s159 = smul.addr %s158, 8
        %s160 = scalar_lea.vmem [#allocation2], %s159
        %p161 = pneg %p41
        %p162 = pneg %p38
        %p163 = pneg %p62
        %p164 = pneg %p59
        %p165 = pneg %p88
        %p166 = pneg %p85
        %s167 = sand.u32 %s75, 1
        %s168 = scalar_lea.sflag [#allocation4], %s167
        %s169 = sand.u32 %s75, 1
        %s170 = smul.addr %s169, 8
        %s171 = scalar_lea.vmem [#allocation7], %s170
        %v172 = vld [vmem:[%s147] sm:$0xff]
        %v173 = vmul.f32 %v172, %v172
        %174 = vadd.xlane.f32.xlu0 %v173
        %v175 = vpop.xlane.xlu0 %174
        %v176 = vrcp.pop 128.0
        %v177 = vmul.f32 %v175, %v176
        %v178 = vadd.f32 %v177, 1e-06
        %v179 = vrsqrt.pop %v178
        %v180 = vmul.f32 %v172, %v179
        %v181 = vld [vmem:[#allocation5] sm:$0x1]
        %v183 = vlaneseq
        %v184 = vshrl.u32 %v183, 7
        %v185 = vsub.s32 0, %v184
        %v186 = vrot.slane %v181, %v185
        %v188 = vmul.f32 %v180, %v186
        %189 = vst [vmem:[%s171] sm:$0xff] %v188
        %s190 = sand.u32 %s75, 1
        %s191 = scalar_lea.sflag [#allocation4], %s190
        %s192 = sand.u32 %s75, 1
        %s193 = smul.addr %s192, 8
        %s194 = scalar_lea.vmem [#allocation7], %s193
        // Predicated region
        $region37: #{tpu_custom_call.1} parent=27 // pred_check
          %p195 = pneg %p85
        $region38: #{tpu_custom_call.1} parent=27 // pred_check_branch
          %197 = sbr.rel (%p195) target = $region40
        $region39: #{tpu_custom_call.1} parent=27 // pred_region
          %s199 = ssub.s32 128, 128
          %200 = vsyncadd %s191, %s199
          %s201 = smul.addr %s20, 128
          %s202 = scalar_lea.hbm %s2, %s201
          %s204 = sshll.u32 %s194, 4
          %s205 = int_to_ptr.vmem [resolvable:$true] %s204
          %207 = dma.vmem_to_hbm [thread:$0]  %s205, 128, %s202, %s191
        $region40: #{tpu_custom_call.1} parent=27 // pred_fallthru
          _
      $region28: #{tpu_custom_call.1} parent=5 // pred_fallthru
        _
      %p208 = scmp.le.s32.totalorder 2, %s15
      // Predicated region
      $region41: #{tpu_custom_call.1} parent=5 // pred_check
        %p209 = pneg %p208
      $region42: #{tpu_custom_call.1} parent=5 // pred_check_branch
        %211 = sbr.rel (%p209) target = $region44
      $region43: #{tpu_custom_call.1} parent=5 // pred_region
        %s212 = ssub.s32 %s15, 2
        // Predicated region
        $region45: #{tpu_custom_call.1} parent=43 // pred_check
          %p213 = pneg %p91
        $region46: #{tpu_custom_call.1} parent=43 // pred_check_branch
          %215 = sbr.rel (%p213) target = $region48
        $region47: #{tpu_custom_call.1} parent=43 // pred_region
          %s216 = sand.u32 %s76, 1
          %s217 = scalar_lea.sflag [#allocation4], %s216
          %s218 = sand.u32 %s76, 1
          %s219 = smul.addr %s218, 8
          %s220 = scalar_lea.vmem [#allocation7], %s219
          %221 = dma.done %s217, 128
        $region48: #{tpu_custom_call.1} parent=43 // pred_fallthru
          _
      $region44: #{tpu_custom_call.1} parent=5 // pred_fallthru
        _
    $region6: #{tpu_custom_call.1} parent=1 // loop_footer
      %s19 = sadd.s32 1, %s15
    $region7: #{tpu_custom_call.1} parent=1 // loop_footer_branch
      %14 = sbr.rel target = $region3
    $region8: #{tpu_custom_call.1} parent=1 // loop_exit
      _
    %222 = vsyncpa [#allocation3], 1
    %s223 = scalar_lea.sflag [#allocation3], 1
    %224 = vsyncpa %s223, 1
    %225 = vsyncpa [#allocation6], 1
    %226 = vsyncpa [#allocation4], 1
    %s227 = scalar_lea.sflag [#allocation4], 1
    %228 = vsyncpa %s227, 1

</llo_original>
